<compile_context>
chip_gen: v7x
topology: tpu7x:2x2x1
jax: 0.10.0
libtpu: 0.0.40
codegen_flags: <defaults>
</compile_context>

<pallas_src>
import functools

import jax
import jax.numpy as jnp
from jax.experimental import pallas as pl
from jax.experimental.pallas import tpu as pltpu

_FIELD_BITS = 10                      # 3 x 10-bit packed per-lane counters
_FIELD_MASK = (1 << _FIELD_BITS) - 1


def _dice_count_kernel(probs_ref, true_ref, counts_ref, *accs,
                       hw, tiles_per_split, num_tiles, compute_dtype, packed):
    """Per-(image, split), per-class [tp, pred_count, true_count].

    probs_ref : (C, TP)        class scores, pixels lane-dense (native layout)
    true_ref  : (1, TP)        ground-truth class label per pixel (narrow int)
    counts_ref: (1, 1, 3, C)   int32 output block for the current (image, split)
    accs      : 1 packed (or 3 unpacked) (C, TP) int32 VMEM accumulators
    """
    s = pl.program_id(1)                      # split index (v7x dual-TC)
    t = pl.program_id(2)                      # pixel-tile index within split
    g = s * tiles_per_split + t               # global pixel-tile index

    n_classes, tile = probs_ref.shape

    def accumulate(mask_tail):
        probs = probs_ref[...].astype(compute_dtype)           # (C, TP)
        labels = true_ref[...].astype(jnp.int32)               # (1, TP)

        # argmax over the class (sublane) axis, first-max-wins (torch.max).
        row = jax.lax.broadcasted_iota(jnp.int32, (n_classes, tile), 0)
        max_val = jnp.max(probs, axis=0, keepdims=True)        # (1, TP)
        pred = jnp.min(jnp.where(probs == max_val, row, n_classes),
                       axis=0, keepdims=True)                  # (1, TP) int32

        if mask_tail:
            # Ragged H*W tail: the last block DMAs garbage past hw; map those
            # pixels to "no class" (cheap (1, TP) selects, not (C, TP) ANDs).
            col = jax.lax.broadcasted_iota(jnp.int32, (1, tile), 1)
            valid = (g * tile + col) < hw
            pred = jnp.where(valid, pred, n_classes)
            labels = jnp.where(valid, labels, -1)

        pred_eq = pred == row                                  # (C, TP)
        true_eq = labels == row                                # (C, TP)
        tp_eq = jnp.logical_and(pred_eq, true_eq)              # (C, TP)

        if packed:
            incs = ((jnp.where(tp_eq, 1, 0)
                     + jnp.where(pred_eq, 1 << _FIELD_BITS, 0)
                     + jnp.where(true_eq, 1 << (2 * _FIELD_BITS), 0)
                     ).astype(jnp.int32),)
        else:
            incs = (tp_eq.astype(jnp.int32), pred_eq.astype(jnp.int32),
                    true_eq.astype(jnp.int32))

        @pl.when(t == 0)                      # fold zero-init into first tile
        def _():
            for acc, inc in zip(accs, incs):
                acc[...] = inc

        @pl.when(t > 0)
        def _():
            for acc, inc in zip(accs, incs):
                acc[...] += inc

    if hw % tile == 0:
        accumulate(mask_tail=False)           # static elision of the tail mask
    else:
        last_g = num_tiles - 1

        @pl.when(g != last_g)
        def _():
            accumulate(mask_tail=False)       # unmasked fast path

        @pl.when(g == last_g)
        def _():
            accumulate(mask_tail=True)        # masked path, last tile only

    @pl.when(t == pl.num_programs(2) - 1)
    def _():
        # Once per (image, split): unpack per-lane fields, lane-reduce, store.
        if packed:
            acc = accs[0][...]
            tp_c = jnp.sum(acc & _FIELD_MASK, axis=-1)
            pr_c = jnp.sum((acc >> _FIELD_BITS) & _FIELD_MASK, axis=-1)
            tr_c = jnp.sum((acc >> (2 * _FIELD_BITS)) & _FIELD_MASK, axis=-1)
        else:
            tp_c = jnp.sum(accs[0][...], axis=-1)
            pr_c = jnp.sum(accs[1][...], axis=-1)
            tr_c = jnp.sum(accs[2][...], axis=-1)
        counts = jnp.stack([tp_c, pr_c, tr_c], axis=0)         # (3, C)
        counts_ref[...] = counts.reshape(counts_ref.shape)


def _chip_info():
    """(generation, tensorcores_per_chip, vmem_capacity_bytes) best-effort."""
    gen, cores, cap = 6, 1, 128 * 1024 * 1024
    try:
        kind = jax.devices()[0].device_kind.lower()
    except Exception:
        kind = ""
    if "v7" in kind or "7x" in kind:
        gen, cores, cap = 7, 2, 64 * 1024 * 1024
    elif "v6" in kind:
        gen, cores, cap = 6, 1, 128 * 1024 * 1024
    elif "v5" in kind:
        gen, cores, cap = 5, 1, 128 * 1024 * 1024
    elif "v4" in kind:
        gen, cores, cap = 4, 2, 64 * 1024 * 1024
    elif "v3" in kind or "v2" in kind:
        gen, cores, cap = 3, 2, 32 * 1024 * 1024
    try:
        cap = int(pltpu.get_tpu_info().vmem_capacity_bytes)
    except Exception:
        pass
    return gen, cores, cap


def _vmem_budget(cap):
    """(tile budget bytes, scoped vmem_limit_bytes) derived per generation."""
    limit = min((cap * 3) // 4, 96 * 1024 * 1024)    # v7x ~48 MiB, v5e/v6e 96
    budget = (limit * 3) // 4                        # headroom for pipeline
    return budget, limit


def _pick_pixel_tile(requested, hw, bytes_per_col, budget):
    """Largest 128-multiple pixel tile that fits the VMEM budget."""
    fit = max(128, (budget // bytes_per_col) // 128 * 128)
    padded_hw = pl.cdiv(hw, 128) * 128
    requested = max(128, (requested // 128) * 128)
    return int(min(requested, fit, padded_hw))


@functools.partial(jax.jit, static_argnames=("pixel_tile",))
def segmentation_dice_coefficient(true_masks, out, *, pixel_tile=65536):
    """JAX/Pallas equivalent of SegmentationDiceCoefficient.forward.

    true_masks : (N, H, W) integer class labels
    out        : (N, C, H, W) class scores
    returns    : (C,) float32 dice coefficient per class
    """
    n, c, h, w = out.shape
    hw = h * w

    gen, cores, vmem_cap = _chip_info()
    budget, vmem_limit = _vmem_budget(vmem_cap)

    # Native (N, C, HW) layout: pixels lane-dense, no NCHW->NHWC transpose.
    if jnp.dtype(out.dtype).itemsize > 4:
        out = out.astype(jnp.float32)                # f64 not supported in VMEM
    probs = out.reshape(n, c, hw)

    # Keep labels in their narrow native integer dtype (no wrapper int32 copy,
    # fewer kernel HBM bytes); widened to int32 in-kernel.
    labels = true_masks.reshape(n, 1, hw)
    if not (jnp.issubdtype(labels.dtype, jnp.integer)
            and jnp.dtype(labels.dtype).itemsize <= 4):
        labels = labels.astype(jnp.int32)

    probs_isz = jnp.dtype(probs.dtype).itemsize
    lbl_isz = jnp.dtype(labels.dtype).itemsize

    # bf16 VALU exists on v6e/v7x: keep bf16 native there; upcast elsewhere.
    if jnp.dtype(probs.dtype) == jnp.dtype(jnp.bfloat16) and gen >= 6:
        compute_dtype = jnp.bfloat16
    else:
        compute_dtype = jnp.float32

    def plan(acc_words_per_class_col):
        # double-buffered probs + labels inputs, plus int32 accumulator(s).
        bytes_per_col = (2 * c * probs_isz + 2 * lbl_isz
                         + acc_words_per_class_col * c * 4)
        tile = _pick_pixel_tile(pixel_tile, hw, bytes_per_col, budget)
        num_tiles = int(pl.cdiv(hw, tile))
        # v7x (2 TCs): give both cores parallel work when N == 1.
        split = 2 if (cores >= 2 and n == 1
                      and num_tiles >= 2 and num_tiles % 2 == 0) else 1
        return tile, num_tiles, split, num_tiles // split

    tile, num_tiles, split, tiles_per_split = plan(1)
    packed = tiles_per_split <= _FIELD_MASK          # 10-bit per-lane counters
    if not packed:                                   # huge HW edge case only
        tile, num_tiles, split, tiles_per_split = plan(3)

    kernel = functools.partial(
        _dice_count_kernel, hw=hw, tiles_per_split=tiles_per_split,
        num_tiles=num_tiles, compute_dtype=compute_dtype, packed=packed)

    def px_index_map(b, s, t):
        return (b, 0, s * tiles_per_split + t)

    n_acc = 1 if packed else 3
    counts = pl.pallas_call(
        kernel,
        out_shape=jax.ShapeDtypeStruct((n, split, 3, c), jnp.int32),
        grid_spec=pltpu.PrefetchScalarGridSpec(
            num_scalar_prefetch=0,
            grid=(n, split, tiles_per_split),
            in_specs=[
                pl.BlockSpec((None, c, tile), px_index_map),
                pl.BlockSpec((None, 1, tile), px_index_map),
            ],
            out_specs=pl.BlockSpec((1, 1, 3, c), lambda b, s, t: (b, s, 0, 0)),
            scratch_shapes=[pltpu.VMEM((c, tile), jnp.int32)] * n_acc,
        ),
        compiler_params=pltpu.CompilerParams(
            dimension_semantics=("parallel", "parallel", "arbitrary"),
            vmem_limit_bytes=int(vmem_limit)),
    )(probs, labels)

    totals = jnp.sum(counts, axis=(0, 1))            # (3, C) int32, exact
    tp_c = totals[0].astype(jnp.float32)
    # Promote before adding: avoids int32 overflow for ~1e9+ pixels per class.
    div_c = totals[1].astype(jnp.float32) + totals[2].astype(jnp.float32)
    # TODO(synk): PyTorch returns float64 numpy; JAX defaults to f32 here.
    # TODO(synk): NaN logits: torch.max picks the NaN index; here NaN pixels
    # match no class (NaN == max is false) — edge-case semantic difference.
    return 2.0 * tp_c / div_c


def _reference_dice(true_masks, out):
    """Pure-JAX reference matching the PyTorch semantics (sanity check)."""
    n, c, h, w = out.shape
    probs = jnp.transpose(out, (0, 2, 3, 1)).reshape(-1, c)
    pred = jnp.argmax(probs, axis=1)
    true = true_masks.reshape(-1)
    classes = jnp.arange(c)
    tp = jnp.sum((pred[:, None] == classes) & (true[:, None] == classes), axis=0)
    div = (jnp.sum(pred[:, None] == classes, axis=0)
           + jnp.sum(true[:, None] == classes, axis=0))
    return 2.0 * tp / div


if __name__ == "__main__":
    key = jax.random.PRNGKey(0)
    k1, k2, k3, k4 = jax.random.split(key, 4)

    # 1) Spec-sized case: N=2, C=4, 16x16 (single full tile, unmasked path).
    N, C, H, W = 2, 4, 16, 16
    out_logits = jax.random.normal(k1, (N, C, H, W), dtype=jnp.float32)
    true_masks = jax.random.randint(k2, (N, H, W), 0, C, dtype=jnp.int32)
    dice = jax.block_until_ready(
        segmentation_dice_coefficient(true_masks, out_logits))
    ref = _reference_dice(true_masks, out_logits)
    assert dice.shape == (C,)
    assert jnp.allclose(dice, ref, atol=1e-6, rtol=1e-6, equal_nan=True)

    # 2) Ragged multi-tile case: N=1, C=5, 20x20 with a tiny forced tile —
    #    exercises cross-tile accumulation, the masked last tile, and (on v7x)
    #    the dual-TensorCore split path.
    N2, C2, H2, W2 = 1, 5, 20, 20
    out2 = jax.random.normal(k3, (N2, C2, H2, W2), dtype=jnp.float32)
    tm2 = jax.random.randint(k4, (N2, H2, W2), 0, C2, dtype=jnp.int32)
    dice2 = jax.block_until_ready(
        segmentation_dice_coefficient(tm2, out2, pixel_tile=128))
    ref2 = _reference_dice(tm2, out2)
    assert jnp.allclose(dice2, ref2, atol=1e-6, rtol=1e-6, equal_nan=True)

    print("KERNEL_OK")
</pallas_src>

<mosaic_0001>
module attributes {stable_mosaic.version = 11 : i64} {
  func.func @_dice_count_kernel(%arg0: i32, %arg1: i32, %arg2: i32, %arg3: memref<1x4x256xf32, #tpu.memory_space<vmem>>, %arg4: memref<1x1x256xi32, #tpu.memory_space<vmem>>, %arg5: memref<1x1x3x4xi32, #tpu.memory_space<vmem>>, %arg6: memref<4x256xi32, #tpu.memory_space<vmem>>) attributes {dimension_semantics = [#tpu.dimension_semantics<parallel>, #tpu.dimension_semantics<parallel>, #tpu.dimension_semantics<arbitrary>], iteration_bounds = array<i64: 2, 1, 1>, scalar_prefetch = 0 : i64, scratch_operands = 1 : i64, tpu.core_type = #tpu.core_type<tc>, window_params = [{transform_indices = @transform_0, window_bounds = array<i64: 1, 4, 256>}, {transform_indices = @transform_1, window_bounds = array<i64: 1, 1, 256>}, {transform_indices = @transform_2, window_bounds = array<i64: 1, 1, 3, 4>}]} {
    %c0 = arith.constant 0 : index
    %c0_0 = arith.constant 0 : index
    %c0_1 = arith.constant 0 : index
    %0 = vector.load %arg3[%c0, %c0_0, %c0_1] : memref<1x4x256xf32, #tpu.memory_space<vmem>>, vector<1x4x256xf32>
    %1 = vector.shape_cast %0 : vector<1x4x256xf32> to vector<4x256xf32>
    %c0_2 = arith.constant 0 : index
    %c0_3 = arith.constant 0 : index
    %c0_4 = arith.constant 0 : index
    %2 = vector.load %arg4[%c0_2, %c0_3, %c0_4] : memref<1x1x256xi32, #tpu.memory_space<vmem>>, vector<1x1x256xi32>
    %3 = vector.shape_cast %2 : vector<1x1x256xi32> to vector<1x256xi32>
    %4 = tpu.iota {dimensions = array<i32: 0>} : vector<4x256xi32>
    %cst = arith.constant dense<0xFF800000> : vector<256xf32>
    %5 = vector.multi_reduction <maximumf>, %1, %cst [0] : vector<4x256xf32> to vector<256xf32>
    %6 = vector.shape_cast %5 : vector<256xf32> to vector<1x256xf32>
    %7 = vector.broadcast %6 : vector<1x256xf32> to vector<4x256xf32>
    %8 = arith.cmpf oeq, %1, %7 : vector<4x256xf32>
    %c4_i32 = arith.constant 4 : i32
    %9 = vector.broadcast %c4_i32 : i32 to vector<4x256xi32>
    %10 = arith.select %8, %4, %9 : vector<4x256xi1>, vector<4x256xi32>
    %cst_5 = arith.constant dense<2147483647> : vector<256xi32>
    %11 = vector.multi_reduction <minsi>, %10, %cst_5 [0] : vector<4x256xi32> to vector<256xi32>
    %12 = vector.shape_cast %11 : vector<256xi32> to vector<1x256xi32>
    %13 = vector.broadcast %12 : vector<1x256xi32> to vector<4x256xi32>
    %14 = arith.cmpi eq, %13, %4 : vector<4x256xi32>
    %15 = vector.broadcast %3 : vector<1x256xi32> to vector<4x256xi32>
    %16 = arith.cmpi eq, %15, %4 : vector<4x256xi32>
    %17 = arith.andi %14, %16 : vector<4x256xi1>
    %c1_i32 = arith.constant 1 : i32
    %c0_i32 = arith.constant 0 : i32
    %18 = vector.broadcast %c1_i32 : i32 to vector<4x256xi32>
    %19 = vector.broadcast %c0_i32 : i32 to vector<4x256xi32>
    %20 = arith.select %17, %18, %19 : vector<4x256xi1>, vector<4x256xi32>
    %c1024_i32 = arith.constant 1024 : i32
    %c0_i32_6 = arith.constant 0 : i32
    %21 = vector.broadcast %c1024_i32 : i32 to vector<4x256xi32>
    %22 = vector.broadcast %c0_i32_6 : i32 to vector<4x256xi32>
    %23 = arith.select %14, %21, %22 : vector<4x256xi1>, vector<4x256xi32>
    %24 = arith.addi %20, %23 : vector<4x256xi32>
    %c1048576_i32 = arith.constant 1048576 : i32
    %c0_i32_7 = arith.constant 0 : i32
    %25 = vector.broadcast %c1048576_i32 : i32 to vector<4x256xi32>
    %26 = vector.broadcast %c0_i32_7 : i32 to vector<4x256xi32>
    %27 = arith.select %16, %25, %26 : vector<4x256xi1>, vector<4x256xi32>
    %28 = arith.addi %24, %27 : vector<4x256xi32>
    %c0_i32_8 = arith.constant 0 : i32
    %29 = arith.cmpi eq, %arg2, %c0_i32_8 : i32
    %30 = arith.extui %29 : i1 to i32
    %c0_i32_9 = arith.constant 0 : i32
    %31 = arith.cmpi ne, %30, %c0_i32_9 : i32
    scf.if %31 {
      %c0_14 = arith.constant 0 : index
      %c0_15 = arith.constant 0 : index
      %38 = vector.load %arg6[%c0_14, %c0_15] : memref<4x256xi32, #tpu.memory_space<vmem>>, vector<4x256xi32>
      tpu.vector_store %arg6[%c0_14, %c0_15], %28 {strides = array<i32>} : memref<4x256xi32, #tpu.memory_space<vmem>>, vector<4x256xi32>,
    } else {
    }
    %c0_i32_10 = arith.constant 0 : i32
    %32 = arith.cmpi sgt, %arg2, %c0_i32_10 : i32
    %33 = arith.extui %32 : i1 to i32
    %c0_i32_11 = arith.constant 0 : i32
    %34 = arith.cmpi ne, %33, %c0_i32_11 : i32
    scf.if %34 {
      %c0_14 = arith.constant 0 : index
      %c0_15 = arith.constant 0 : index
      %38 = vector.load %arg6[%c0_14, %c0_15] : memref<4x256xi32, #tpu.memory_space<vmem>>, vector<4x256xi32>
      %39 = arith.addi %38, %28 : vector<4x256xi32>
      %c0_16 = arith.constant 0 : index
      %c0_17 = arith.constant 0 : index
      %40 = vector.load %arg6[%c0_16, %c0_17] : memref<4x256xi32, #tpu.memory_space<vmem>>, vector<4x256xi32>
      tpu.vector_store %arg6[%c0_16, %c0_17], %39 {strides = array<i32>} : memref<4x256xi32, #tpu.memory_space<vmem>>, vector<4x256xi32>,
    } else {
    }
    %c0_i32_12 = arith.constant 0 : i32
    %35 = arith.cmpi eq, %arg2, %c0_i32_12 : i32
    %36 = arith.extui %35 : i1 to i32
    %c0_i32_13 = arith.constant 0 : i32
    %37 = arith.cmpi ne, %36, %c0_i32_13 : i32
    scf.if %37 {
      %c0_14 = arith.constant 0 : index
      %c0_15 = arith.constant 0 : index
      %38 = vector.load %arg6[%c0_14, %c0_15] : memref<4x256xi32, #tpu.memory_space<vmem>>, vector<4x256xi32>
      %c1023_i32 = arith.constant 1023 : i32
      %39 = vector.broadcast %c1023_i32 : i32 to vector<4x256xi32>
      %40 = arith.andi %38, %39 : vector<4x256xi32>
      %cst_16 = arith.constant dense<0> : vector<4xi32>
      %41 = vector.multi_reduction <add>, %40, %cst_16 [1] : vector<4x256xi32> to vector<4xi32>
      %c10_i32 = arith.constant 10 : i32
      %42 = vector.broadcast %c10_i32 : i32 to vector<4x256xi32>
      %43 = arith.shrsi %38, %42 : vector<4x256xi32>
      %c1023_i32_17 = arith.constant 1023 : i32
      %44 = vector.broadcast %c1023_i32_17 : i32 to vector<4x256xi32>
      %45 = arith.andi %43, %44 : vector<4x256xi32>
      %cst_18 = arith.constant dense<0> : vector<4xi32>
      %46 = vector.multi_reduction <add>, %45, %cst_18 [1] : vector<4x256xi32> to vector<4xi32>
      %c20_i32 = arith.constant 20 : i32
      %47 = vector.broadcast %c20_i32 : i32 to vector<4x256xi32>
      %48 = arith.shrsi %38, %47 : vector<4x256xi32>
      %c1023_i32_19 = arith.constant 1023 : i32
      %49 = vector.broadcast %c1023_i32_19 : i32 to vector<4x256xi32>
      %50 = arith.andi %48, %49 : vector<4x256xi32>
      %cst_20 = arith.constant dense<0> : vector<4xi32>
      %51 = vector.multi_reduction <add>, %50, %cst_20 [1] : vector<4x256xi32> to vector<4xi32>
      %52 = vector.shape_cast %41 : vector<4xi32> to vector<1x4xi32>
      %53 = vector.shape_cast %46 : vector<4xi32> to vector<1x4xi32>
      %54 = vector.shape_cast %51 : vector<4xi32> to vector<1x4xi32>
      %55 = tpu.concatenate %52, %53, %54 in 0 : vector<1x4xi32>, vector<1x4xi32>, vector<1x4xi32> -> vector<3x4xi32>
      %56 = vector.shape_cast %55 : vector<3x4xi32> to vector<1x1x3x4xi32>
      %c0_21 = arith.constant 0 : index
      %c0_22 = arith.constant 0 : index
      %c0_23 = arith.constant 0 : index
      %c0_24 = arith.constant 0 : index
      %57 = vector.load %arg5[%c0_21, %c0_22, %c0_23, %c0_24] : memref<1x1x3x4xi32, #tpu.memory_space<vmem>>, vector<1x1x3x4xi32>
      tpu.vector_store %arg5[%c0_21, %c0_22, %c0_23, %c0_24], %56 {strides = array<i32>} : memref<1x1x3x4xi32, #tpu.memory_space<vmem>>, vector<1x1x3x4xi32>,
    } else {
    }
    return
  }
  func.func @transform_0(%arg0: i32, %arg1: i32, %arg2: i32) -> (i32, i32, i32) {
    %c1_i32 = arith.constant 1 : i32
    %0 = arith.muli %arg1, %c1_i32 : i32
    %1 = arith.addi %0, %arg2 : i32
    %c0_i32 = arith.constant 0 : i32
    %c0_i32_0 = arith.constant 0 : i32
    return %arg0, %c0_i32, %1 : i32, i32, i32
  }
  func.func @transform_1(%arg0: i32, %arg1: i32, %arg2: i32) -> (i32, i32, i32) {
    %c1_i32 = arith.constant 1 : i32
    %0 = arith.muli %arg1, %c1_i32 : i32
    %1 = arith.addi %0, %arg2 : i32
    %c0_i32 = arith.constant 0 : i32
    %c0_i32_0 = arith.constant 0 : i32
    return %arg0, %c0_i32, %1 : i32, i32, i32
  }
  func.func @transform_2(%arg0: i32, %arg1: i32, %arg2: i32) -> (i32, i32, i32, i32) {
    %c0_i32 = arith.constant 0 : i32
    %c0_i32_0 = arith.constant 0 : i32
    %c0_i32_1 = arith.constant 0 : i32
    return %arg0, %arg1, %c0_i32, %c0_i32_0 : i32, i32, i32, i32
  }
}

</mosaic_0001>

<llo_original>
// kernel: segmentation_dice_coefficient.1
$region0: #{segmentation_dice_coefficient.1}
  #allocation0 [shape = 'u32[]', space=smem, size = 0x4, offset = 0x4, fixed_abs, tag = 'smem constant byte address 0x4 - core index']
  #allocation1 [shape = 'u32[144,128]{1,0:T(1,128)}', space=vmem, size = 0x12000, scoped, tag = 'internal scratch']
  #allocation2 [shape = 's32[4,256]{1,0:T(4,128)}', space=vmem, size = 0x1000, scoped, tag = 'scratch operand']
  %s0 = inlined_call_operand.hbm [shape: f32[2,4,256], index: 0, kind: input, shape index: {}]
  %s1 = inlined_call_operand.hbm [shape: s32[2,1,256], index: 1, kind: input, shape index: {}]
  %s2 = inlined_call_operand.hbm [shape: s32[2,1,3,4], index: 2, kind: output, shape index: {}]
  %s3 = sld [smem:[#allocation0]]
  $region61: #{segmentation_dice_coefficient.1} parent=0
    _
  %s5 = ssub.s32 1, %s3
  %s6 = scalar_select 0, %s5, %s3
  $region1: #{segmentation_dice_coefficient.1} parent=0
    #allocation3 [shape = 'u8[8192]{0}', space=vmem, size = 0x2000, scoped, tag = 'input window, operand 0']
    #allocation4 [shape = 's32[2]{0}', space=sflag, size = 0x8, scoped, tag = 'scoped memory for segmentation_dice_coefficient.1']
    #allocation5 [shape = 's32[2]{0}', space=sflag, size = 0x8, scoped, tag = 'scoped memory for segmentation_dice_coefficient.1']
    #allocation6 [shape = 'u8[2048]{0}', space=vmem, size = 0x800, scoped, tag = 'input window, operand 1']
    #allocation7 [shape = 's32[2]{0}', space=sflag, size = 0x8, scoped, tag = 'scoped memory for segmentation_dice_coefficient.1']
    #allocation8 [shape = 'u8[4096]{0}', space=vmem, size = 0x1000, scoped, tag = 'output window, operand 0']
    %7 = vsyncpa [#allocation4], 0
    %s8 = scalar_lea.sflag [#allocation4], 1
    %9 = vsyncpa %s8, 0
    %10 = vsyncpa [#allocation7], 0
    %s11 = scalar_lea.sflag [#allocation7], 1
    %12 = vsyncpa %s11, 0
    %13 = vsyncpa [#allocation5], 0
    %s14 = scalar_lea.sflag [#allocation5], 1
    %15 = vsyncpa %s14, 0
    loop: start=0, step=1, limit=4
    $region2: #{segmentation_dice_coefficient.1} parent=1 // loop_pre_header
      _
    $region3: #{segmentation_dice_coefficient.1} parent=1 // loop_header
      %s17 = sphi 0, %s21
      %p18 = scmp.ge.s32.totalorder %s17, 4
      %s24 = sphi 0, %s43
      %s25 = sphi 0, %s39
      %s26 = sphi 0, %s35
      %s27 = sphi 0, %s24
      %s28 = sphi 0, %s25
      %s29 = sphi 0, %s26
      %s30 = sphi 0, %s27
      %s31 = sphi 0, %s28
      %s32 = sphi 0, %s29
      %s50 = sphi 0, %s52
      %s53 = sphi 0, %s50
      %s54 = sphi 0, %s53
      %s70 = sphi 0, %s54
      %s80 = sphi 0, %s82
      %s83 = sphi 0, %s80
      %s84 = sphi 0, %s83
      %s100 = sphi 0, %s84
      %s108 = sphi 0, %s110
      %s111 = sphi 0, %s108
      %s112 = sphi 0, %s111
      %s128 = sphi 0, %s112
    $region4: #{segmentation_dice_coefficient.1} parent=1 // loop_header_branch
      %20 = sbr.rel (%p18) target = $region8
    $region5: #{segmentation_dice_coefficient.1} parent=1 // loop_body
      %s22 = ssub.s32 %s17, 1
      %s23 = ssub.s32 %s17, 2
      %s33 = sadd.s32 1, %s26
      %p34 = scmp.ge.s32.totalorder %s33, 1
      %s35 = scalar_select %p34, 0, %s33
      %s36 = sadd.s32 1, %s25
      %s37 = scalar_select %p34, %s36, %s25
      %p38 = scmp.ge.s32.totalorder %s37, 1
      %s39 = scalar_select %p38, 0, %s37
      %s40 = sadd.s32 1, %s24
      %s41 = scalar_select %p38, %s40, %s24
      %p42 = scmp.ge.s32.totalorder %s41, 2
      %s43 = scalar_select %p42, 0, %s41
      %s44 = sadd.s32 %s25, %s26
      %s45 = sadd.s32 %s39, %s35
      %s46 = ssub.s32 %s24, %s43
      %s47 = ssub.s32 %s44, %s45
      %s48 = sor.u32 %s46, %s47
      %p49 = scmp.eq.s32.totalorder %s48, 0
      %s51 = sadd.s32 %s50, 1
      %s52 = scalar_select %p49, %s50, %s51
      %p55 = pneg %p49
      %p56 = scmp.eq.s32.totalorder %s17, 1
      %p57 = por %p55, %p56
      %p58 = scmp.ne.s32.totalorder %s50, %s53
      %p59 = scmp.eq.s32.totalorder %s17, 0
      %p60 = por %p58, %p59
      %p61 = scmp.ne.s32.totalorder %s50, %s53
      %p62 = scmp.eq.s32.totalorder %s22, 1
      %p63 = por %p61, %p62
      %p64 = scmp.ne.s32.totalorder %s53, %s54
      %p65 = scmp.eq.s32.totalorder %s22, 0
      %p66 = por %p64, %p65
      %p67 = scmp.ne.s32.totalorder %s53, %s54
      %p68 = scmp.eq.s32.totalorder %s23, 1
      %p69 = por %p67, %p68
      %p71 = scmp.ne.s32.totalorder %s54, %s70
      %p72 = scmp.eq.s32.totalorder %s23, 0
      %p73 = por %p71, %p72
      %s74 = sadd.s32 %s25, %s26
      %s75 = sadd.s32 %s39, %s35
      %s76 = ssub.s32 %s24, %s43
      %s77 = ssub.s32 %s74, %s75
      %s78 = sor.u32 %s76, %s77
      %p79 = scmp.eq.s32.totalorder %s78, 0
      %s81 = sadd.s32 %s80, 1
      %s82 = scalar_select %p79, %s80, %s81
      %p85 = pneg %p79
      %p86 = scmp.eq.s32.totalorder %s17, 1
      %p87 = por %p85, %p86
      %p88 = scmp.ne.s32.totalorder %s80, %s83
      %p89 = scmp.eq.s32.totalorder %s17, 0
      %p90 = por %p88, %p89
      %p91 = scmp.ne.s32.totalorder %s80, %s83
      %p92 = scmp.eq.s32.totalorder %s22, 1
      %p93 = por %p91, %p92
      %p94 = scmp.ne.s32.totalorder %s83, %s84
      %p95 = scmp.eq.s32.totalorder %s22, 0
      %p96 = por %p94, %p95
      %p97 = scmp.ne.s32.totalorder %s83, %s84
      %p98 = scmp.eq.s32.totalorder %s23, 1
      %p99 = por %p97, %p98
      %p101 = scmp.ne.s32.totalorder %s84, %s100
      %p102 = scmp.eq.s32.totalorder %s23, 0
      %p103 = por %p101, %p102
      %s104 = ssub.s32 %s24, %s43
      %s105 = ssub.s32 %s25, %s39
      %s106 = sor.u32 %s104, %s105
      %p107 = scmp.eq.s32.totalorder %s106, 0
      %s109 = sadd.s32 %s108, 1
      %s110 = scalar_select %p107, %s108, %s109
      %p113 = pneg %p107
      %p114 = scmp.eq.s32.totalorder %s17, 1
      %p115 = por %p113, %p114
      %p116 = scmp.ne.s32.totalorder %s108, %s111
      %p117 = scmp.eq.s32.totalorder %s17, 0
      %p118 = por %p116, %p117
      %p119 = scmp.ne.s32.totalorder %s108, %s111
      %p120 = scmp.eq.s32.totalorder %s22, 1
      %p121 = por %p119, %p120
      %p122 = scmp.ne.s32.totalorder %s111, %s112
      %p123 = scmp.eq.s32.totalorder %s22, 0
      %p124 = por %p122, %p123
      %p125 = scmp.ne.s32.totalorder %s111, %s112
      %p126 = scmp.eq.s32.totalorder %s23, 1
      %p127 = por %p125, %p126
      %p129 = scmp.ne.s32.totalorder %s112, %s128
      %p130 = scmp.eq.s32.totalorder %s23, 0
      %p131 = por %p129, %p130
      %p132 = scmp.le.s32.totalorder 1, %s17
      %p133 = scmp.lt.s32.totalorder %s17, 3
      %p134 = pnand %p132, %p133
      %p135 = pneg %p134
      // Predicated region
      $region9: #{segmentation_dice_coefficient.1} parent=5 // pred_check
        _
      $region10: #{segmentation_dice_coefficient.1} parent=5 // pred_check_branch
        %137 = sbr.rel (%p134) target = $region12
      $region11: #{segmentation_dice_coefficient.1} parent=5 // pred_region
        %s138 = ssub.s32 %s17, 1
      $region12: #{segmentation_dice_coefficient.1} parent=5 // pred_fallthru
        _
      %p139 = scmp.lt.s32.totalorder %s17, 2
      // Predicated region
      $region13: #{segmentation_dice_coefficient.1} parent=5 // pred_check
        %p140 = pneg %p139
      $region14: #{segmentation_dice_coefficient.1} parent=5 // pred_check_branch
        %142 = sbr.rel (%p140) target = $region16
      $region15: #{segmentation_dice_coefficient.1} parent=5 // pred_region
        // Predicated region
        $region17: #{segmentation_dice_coefficient.1} parent=15 // pred_check
          %p143 = pneg %p60
        $region18: #{segmentation_dice_coefficient.1} parent=15 // pred_check_branch
          %145 = sbr.rel (%p143) target = $region20
        $region19: #{segmentation_dice_coefficient.1} parent=15 // pred_region
          %s146 = sand.u32 %s50, 1
          %s147 = scalar_lea.sflag [#allocation4], %s146
          %s148 = sand.u32 %s50, 1
          %s149 = smul.addr %s148, 8
          %s150 = scalar_lea.vmem [#allocation3], %s149
          %s151 = sadd.s32 %s25, %s26
          %s152 = smul.u32 2, %s151
          %s154 = ssub.s32 128, 128
          %155 = vsyncadd %s147, %s154
          %s156 = smul.addr %s24, 2
          %s157 = sadd.s32 %s152, %s156
          %s158 = smul.addr %s157, 64
          %s159 = scalar_lea.hbm %s0, %s158
          %s161 = sshll.u32 %s150, 4
          %s162 = int_to_ptr.vmem [resolvable:$true] %s161
          %164 = dma.hbm_to_vmem [thread:$0]  %s159, 128, %s162, %s147
        $region20: #{segmentation_dice_coefficient.1} parent=15 // pred_fallthru
          _
        // Predicated region
        $region21: #{segmentation_dice_coefficient.1} parent=15 // pred_check
          %p165 = pneg %p90
        $region22: #{segmentation_dice_coefficient.1} parent=15 // pred_check_branch
          %167 = sbr.rel (%p165) target = $region24
        $region23: #{segmentation_dice_coefficient.1} parent=15 // pred_region
          %s168 = sand.u32 %s80, 1
          %s169 = scalar_lea.sflag [#allocation7], %s168
          %s170 = sand.u32 %s80, 1
          %s171 = smul.addr %s170, 2
          %s172 = scalar_lea.vmem [#allocation6], %s171
          %s173 = sadd.s32 %s25, %s26
          %s174 = smul.u32 2, %s173
          %s176 = ssub.s32 32, 32
          %177 = vsyncadd %s169, %s176
          %s178 = smul.addr %s24, 2
          %s179 = sadd.s32 %s174, %s178
          %s180 = smul.addr %s179, 16
          %s181 = scalar_lea.hbm %s1, %s180
          %s183 = sshll.u32 %s172, 4
          %s184 = int_to_ptr.vmem [resolvable:$true] %s183
          %186 = dma.hbm_to_vmem [thread:$0]  %s181, 32, %s184, %s169
        $region24: #{segmentation_dice_coefficient.1} parent=15 // pred_fallthru
          _
      $region16: #{segmentation_dice_coefficient.1} parent=5 // pred_fallthru
        _
      %p187 = scmp.le.s32.totalorder 1, %s17
      %p188 = scmp.lt.s32.totalorder %s17, 3
      %p189 = pnand %p187, %p188
      %p190 = pneg %p189
      // Predicated region
      $region25: #{segmentation_dice_coefficient.1} parent=5 // pred_check
        _
      $region26: #{segmentation_dice_coefficient.1} parent=5 // pred_check_branch
        %192 = sbr.rel (%p189) target = $region28
      $region27: #{segmentation_dice_coefficient.1} parent=5 // pred_region
        %s193 = ssub.s32 %s17, 1
        %s194 = sand.u32 %s53, 1
        %s195 = scalar_lea.sflag [#allocation4], %s194
        %s196 = sand.u32 %s53, 1
        %s197 = smul.addr %s196, 8
        %s198 = scalar_lea.vmem [#allocation3], %s197
        // Predicated region
        $region29: #{segmentation_dice_coefficient.1} parent=27 // pred_check
          %p199 = pneg %p66
        $region30: #{segmentation_dice_coefficient.1} parent=27 // pred_check_branch
          %201 = sbr.rel (%p199) target = $region32
        $region31: #{segmentation_dice_coefficient.1} parent=27 // pred_region
          %202 = dma.done %s195, 128
        $region32: #{segmentation_dice_coefficient.1} parent=27 // pred_fallthru
          _
        %s203 = sand.u32 %s83, 1
        %s204 = scalar_lea.sflag [#allocation7], %s203
        %s205 = sand.u32 %s83, 1
        %s206 = smul.addr %s205, 2
        %s207 = scalar_lea.vmem [#allocation6], %s206
        // Predicated region
        $region33: #{segmentation_dice_coefficient.1} parent=27 // pred_check
          %p208 = pneg %p96
        $region34: #{segmentation_dice_coefficient.1} parent=27 // pred_check_branch
          %210 = sbr.rel (%p208) target = $region36
        $region35: #{segmentation_dice_coefficient.1} parent=27 // pred_region
          %211 = dma.done %s204, 32
        $region36: #{segmentation_dice_coefficient.1} parent=27 // pred_fallthru
          _
        %s212 = sand.u32 %s53, 1
        %s213 = scalar_lea.sflag [#allocation4], %s212
        %s214 = sand.u32 %s53, 1
        %s215 = smul.addr %s214, 8
        %s216 = scalar_lea.vmem [#allocation3], %s215
        %p217 = pneg %p66
        %p218 = pneg %p63
        %s219 = sand.u32 %s83, 1
        %s220 = scalar_lea.sflag [#allocation7], %s219
        %s221 = sand.u32 %s83, 1
        %s222 = smul.addr %s221, 2
        %s223 = scalar_lea.vmem [#allocation6], %s222
        %p224 = pneg %p96
        %p225 = pneg %p93
        %p226 = pneg %p124
        %p227 = pneg %p121
        %s228 = sand.u32 %s111, 1
        %s229 = scalar_lea.sflag [#allocation5], %s228
        %s230 = sand.u32 %s111, 1
        %s231 = smul.addr %s230, 4
        %s232 = scalar_lea.vmem [#allocation8], %s231
        %s233 = sadd.s32 %s28, %s29
        %s234 = smul.u32 2, %s233
        %s235 = sadd.s32 %s28, %s29
        %s236 = smul.u32 2, %s235
        %v237 = vld [vmem:[%s198] sm:$0xff]
        %v238 = vld [vmem:[%s207] sm:$0x3]
        %v239 = vlaneseq
        %v240 = vshrl.u32 %v239, 7
        %v242 = vcombine.high %v237, %v237
        %vm244 = vcmask 1043456
        %v245 = vsel %vm244, %v237, -inf
        %v246 = vrot.slane %v245, 4
        %v247 = vmax.f32 %v245, %v246
        %v248 = vrot.slane %v247, 2
        %v249 = vmax.f32 %v247, %v248
        %v250 = vrot.slane %v249, 1
        %v251 = vmax.f32 %v249, %v250
        %v252 = vsel %vm244, %v242, -inf
        %v253 = vrot.slane %v252, 4
        %v254 = vmax.f32 %v252, %v253
        %v255 = vrot.slane %v254, 2
        %v256 = vmax.f32 %v254, %v255
        %v257 = vrot.slane %v256, 1
        %v258 = vmax.f32 %v256, %v257
        %v261 = vcombine.low %v251, %v258
        %vm263 = vcmp.eq.f32.partialorder %v237, %v261
        %v265 = vunpack.c.l.s4 839922192
        %v266 = vunpack.c.0.s8 %v265
        %v267 = vlaneseq
        %v268 = vshrl.u32 %v267, 7
        %v269 = vsub.s32 %v266, %v268
        %v270 = vrot.slane %v240, %v269
        %v271 = vsel %vm263, %v270, 4
        %v272 = vcombine.high %v271, %v271
        %v273 = vsel %vm244, %v271, 2147483647
        %v274 = vrot.slane %v273, 4
        %vm275 = vcmp.lt.s32.totalorder %v273, %v274
        %v276 = vsel %vm275, %v273, %v274
        %v277 = vrot.slane %v276, 2
        %vm278 = vcmp.lt.s32.totalorder %v276, %v277
        %v279 = vsel %vm278, %v276, %v277
        %v280 = vrot.slane %v279, 1
        %vm281 = vcmp.lt.s32.totalorder %v279, %v280
        %v282 = vsel %vm281, %v279, %v280
        %v283 = vsel %vm244, %v272, 2147483647
        %v284 = vrot.slane %v283, 4
        %vm285 = vcmp.lt.s32.totalorder %v283, %v284
        %v286 = vsel %vm285, %v283, %v284
        %v287 = vrot.slane %v286, 2
        %vm288 = vcmp.lt.s32.totalorder %v286, %v287
        %v289 = vsel %vm288, %v286, %v287
        %v290 = vrot.slane %v289, 1
        %vm291 = vcmp.lt.s32.totalorder %v289, %v290
        %v292 = vsel %vm291, %v289, %v290
        %vm293 = vcmp.eq.s32.totalorder %v282, %v240
        %vm294 = vcmp.eq.s32.totalorder %v292, %v240
        %v295 = vlaneseq
        %v296 = vshrl.u32 %v295, 7
        %v297 = vsub.s32 0, %v296
        %v298 = vrot.slane %v238, %v297
        %v299 = vlaneseq
        %v300 = vshrl.u32 %v299, 7
        %v301 = vsub.s32 1, %v300
        %v302 = vrot.slane %v238, %v301
        %vm303 = vcmp.eq.s32.totalorder %v298, %v240
        %vm304 = vcmp.eq.s32.totalorder %v302, %v240
        %vm305 = vmand %vm293, %vm303
        %vm306 = vmand %vm294, %vm304
        %v307 = vsel %vm305, 1, 0
        %v308 = vsel %vm306, 1, 0
        %v309 = vsel %vm293, 1024, 0
        %v310 = vsel %vm294, 1024, 0
        %v311 = vadd.s32 %v307, %v309
        %v312 = vadd.s32 %v308, %v310
        %v313 = vsel %vm303, 1048576, 0
        %v314 = vsel %vm304, 1048576, 0
        %v315 = vadd.s32 %v311, %v313
        %v316 = vadd.s32 %v312, %v314
        %p317 = scmp.eq.s32.totalorder %s29, 0
        // Predicated region
        $region37: #{segmentation_dice_coefficient.1} parent=27 // pred_check
          %p318 = pneg %p317
        $region38: #{segmentation_dice_coefficient.1} parent=27 // pred_check_branch
          %320 = sbr.rel (%p318) target = $region40
        $region39: #{segmentation_dice_coefficient.1} parent=27 // pred_region
          %v321 = vcombine.low %v315, %v316
          %322 = vst [vmem:[#allocation2] sm:$0xff] %v321
        $region40: #{segmentation_dice_coefficient.1} parent=27 // pred_fallthru
          _
        %p323 = scmp.gt.s32.totalorder %s29, 0
        // Predicated region
        $region41: #{segmentation_dice_coefficient.1} parent=27 // pred_check
          %p324 = pneg %p323
        $region42: #{segmentation_dice_coefficient.1} parent=27 // pred_check_branch
          %326 = sbr.rel (%p324) target = $region44
        $region43: #{segmentation_dice_coefficient.1} parent=27 // pred_region
          %v327 = vld [vmem:[#allocation2] sm:$0xff]
          %v328 = vcombine.low %v315, %v316
          %v329 = vadd.s32 %v327, %v328
          %330 = vst [vmem:[#allocation2] sm:$0xff] %v329
        $region44: #{segmentation_dice_coefficient.1} parent=27 // pred_fallthru
          _
        // Predicated region
        $region45: #{segmentation_dice_coefficient.1} parent=27 // pred_check
          %p331 = pneg %p317
        $region46: #{segmentation_dice_coefficient.1} parent=27 // pred_check_branch
          %333 = sbr.rel (%p331) target = $region48
        $region47: #{segmentation_dice_coefficient.1} parent=27 // pred_region
          %v334 = vld [vmem:[#allocation2] sm:$0xff]
          %v335 = vand.u32 %v334, 1023
          %v336 = vcombine.high %v335, %v335
          %v337 = vsel %vm244, %v335, 0
          %v338 = vsel %vm244, %v336, 0
          %v339 = vadd.s32 %v337, %v338
          %v340 = vand.u32 %v339, 65535
          %v341 = vshrl.u32 %v339, 16
          %v342 = vcvt.s32.f32 %v340
          %v343 = vcvt.s32.f32 %v341
          %344 = vadd.xlane.f32.xlu0 %v342
          %v345 = vpop.xlane.xlu0 %344
          %346 = vadd.xlane.f32.xlu0 %v343
          %v347 = vpop.xlane.xlu0 %346
          %v348 = vcvt.f32.s32 %v345
          %v349 = vcvt.f32.s32 %v347
          %v350 = vshll.u32 %v349, 16
          %v351 = vadd.s32 %v350, %v348
          %v352 = vshra.s32 %v334, 10
          %v353 = vand.u32 %v352, 1023
          %v354 = vcombine.high %v353, %v353
          %v355 = vsel %vm244, %v353, 0
          %v356 = vsel %vm244, %v354, 0
          %v357 = vadd.s32 %v355, %v356
          %v358 = vand.u32 %v357, 65535
          %v359 = vshrl.u32 %v357, 16
          %v360 = vcvt.s32.f32 %v358
          %v361 = vcvt.s32.f32 %v359
          %362 = vadd.xlane.f32.xlu0 %v360
          %v363 = vpop.xlane.xlu0 %362
          %364 = vadd.xlane.f32.xlu0 %v361
          %v365 = vpop.xlane.xlu0 %364
          %v366 = vcvt.f32.s32 %v363
          %v367 = vcvt.f32.s32 %v365
          %v368 = vshll.u32 %v367, 16
          %v369 = vadd.s32 %v368, %v366
          %v370 = vshra.s32 %v334, 20
          %v371 = vand.u32 %v370, 1023
          %v372 = vcombine.high %v371, %v371
          %v373 = vsel %vm244, %v371, 0
          %v374 = vsel %vm244, %v372, 0
          %v375 = vadd.s32 %v373, %v374
          %v376 = vand.u32 %v375, 65535
          %v377 = vshrl.u32 %v375, 16
          %v378 = vcvt.s32.f32 %v376
          %v379 = vcvt.s32.f32 %v377
          %380 = vadd.xlane.f32.xlu0 %v378
          %v381 = vpop.xlane.xlu0 %380
          %382 = vadd.xlane.f32.xlu0 %v379
          %v383 = vpop.xlane.xlu0 %382
          %v384 = vcvt.f32.s32 %v381
          %v385 = vcvt.f32.s32 %v383
          %v386 = vshll.u32 %v385, 16
          %v387 = vadd.s32 %v386, %v384
          %v388 = vlaneseq
          %v389 = vand.u32 %v388, 127
          %v390 = vlaneseq
          %v391 = vshrl.u32 %v390, 7
          %v392 = vsub.s32 %v389, %v391
          %v393 = vrot.slane %v351, %v392
          %v394 = vlaneseq
          %v395 = vshrl.u32 %v394, 7
          %v396 = vsub.s32 %v389, %v395
          %v397 = vrot.slane %v369, %v396
          %v398 = vlaneseq
          %v399 = vshrl.u32 %v398, 7
          %v400 = vsub.s32 %v389, %v399
          %v401 = vrot.slane %v387, %v400
          %vm402 = vcmask 1040384
          %v403 = vsel %vm402, %v393, %v397
          %vm404 = vcmask 1041408
          %v405 = vsel %vm404, %v403, %v401
          %vm406 = vcmask 26624
          %407 = vst.msk [vmem:[%s232] sm:$0x7] %vm406, %v405
        $region48: #{segmentation_dice_coefficient.1} parent=27 // pred_fallthru
          _
        %s408 = sand.u32 %s111, 1
        %s409 = scalar_lea.sflag [#allocation5], %s408
        %s410 = sand.u32 %s111, 1
        %s411 = smul.addr %s410, 4
        %s412 = scalar_lea.vmem [#allocation8], %s411
        // Predicated region
        $region49: #{segmentation_dice_coefficient.1} parent=27 // pred_check
          %p413 = pneg %p121
        $region50: #{segmentation_dice_coefficient.1} parent=27 // pred_check_branch
          %415 = sbr.rel (%p413) target = $region52
        $region51: #{segmentation_dice_coefficient.1} parent=27 // pred_region
          %s417 = ssub.s32 64, 64
          %418 = vsyncadd %s409, %s417
          %s419 = sadd.s32 %s28, %s27
          %s420 = smul.addr %s419, 64
          %s421 = scalar_lea.hbm %s2, %s420
          %s423 = sshll.u32 %s412, 4
          %s424 = int_to_ptr.vmem [resolvable:$true] %s423
          %426 = dma.vmem_to_hbm [thread:$0]  %s424, 64, %s421, %s409
        $region52: #{segmentation_dice_coefficient.1} parent=27 // pred_fallthru
          _
      $region28: #{segmentation_dice_coefficient.1} parent=5 // pred_fallthru
        _
      %p427 = scmp.le.s32.totalorder 2, %s17
      // Predicated region
      $region53: #{segmentation_dice_coefficient.1} parent=5 // pred_check
        %p428 = pneg %p427
      $region54: #{segmentation_dice_coefficient.1} parent=5 // pred_check_branch
        %430 = sbr.rel (%p428) target = $region56
      $region55: #{segmentation_dice_coefficient.1} parent=5 // pred_region
        %s431 = ssub.s32 %s17, 2
        // Predicated region
        $region57: #{segmentation_dice_coefficient.1} parent=55 // pred_check
          %p432 = pneg %p127
        $region58: #{segmentation_dice_coefficient.1} parent=55 // pred_check_branch
          %434 = sbr.rel (%p432) target = $region60
        $region59: #{segmentation_dice_coefficient.1} parent=55 // pred_region
          %s435 = sand.u32 %s112, 1
          %s436 = scalar_lea.sflag [#allocation5], %s435
          %s437 = sand.u32 %s112, 1
          %s438 = smul.addr %s437, 4
          %s439 = scalar_lea.vmem [#allocation8], %s438
          %440 = dma.done %s436, 64
        $region60: #{segmentation_dice_coefficient.1} parent=55 // pred_fallthru
          _
      $region56: #{segmentation_dice_coefficient.1} parent=5 // pred_fallthru
        _
    $region6: #{segmentation_dice_coefficient.1} parent=1 // loop_footer
      %s21 = sadd.s32 1, %s17
    $region7: #{segmentation_dice_coefficient.1} parent=1 // loop_footer_branch
      %16 = sbr.rel target = $region3
    $region8: #{segmentation_dice_coefficient.1} parent=1 // loop_exit
      _
    %441 = vsyncpa [#allocation4], 1
    %s442 = scalar_lea.sflag [#allocation4], 1
    %443 = vsyncpa %s442, 1
    %444 = vsyncpa [#allocation7], 1
    %s445 = scalar_lea.sflag [#allocation7], 1
    %446 = vsyncpa %s445, 1
    %447 = vsyncpa [#allocation5], 1
    %s448 = scalar_lea.sflag [#allocation5], 1
    %449 = vsyncpa %s448, 1

</llo_original>
